<compile_context>
chip_gen: v7x
topology: tpu7x:2x2x1
jax: 0.10.0
libtpu: 0.0.40
codegen_flags: <defaults>
</compile_context>

<pallas_src>
import jax
import jax.numpy as jnp
import numpy as np
from jax.experimental import pallas as pl
from jax.experimental.pallas import tpu as pltpu

ALPHA = 1.0      # module __init__ default alpha=1
GAMMA = 2        # module __init__ default gamma=2
EPS = 1e-7       # module __init__ default eps=1e-07


def _round_up(x, m):
    return (x + m - 1) // m * m


def _cdiv(a, b):
    return -(-a // b)


def _tpu_budgets():
    """Returns (pred bytes per block, vmem_limit_bytes) tuned per generation."""
    kind = ""
    try:
        kind = jax.devices()[0].device_kind.lower()
    except Exception:
        pass
    if "v5" in kind:            # v5e: small default scoped VMEM -> small blocks
        return 1 << 20, 24 << 20
    if "v6" in kind:            # v6e: 128 MiB physical VMEM, lots of headroom
        return 4 << 20, 64 << 20
    return 2 << 20, 40 << 20    # v7x / unknown: 64 MiB physical -> stay modest


def focal_loss(pred, target, *, tile_pixels=2048, batch_block=None,
               reduction="mean"):
    """pred: (N, C, H, W) float logits (f32/bf16), target: (N, H, W) int ids."""
    N, C, H, W = pred.shape
    assert H == W, "original .view() after transpose(1,3) requires H == W"
    P = H * W

    budget_bytes, vmem_limit = _tpu_budgets()
    itemsize = jnp.dtype(pred.dtype).itemsize
    per_pixel_bytes = C * itemsize

    # Lane tile: multiple of 128, capped at the (rounded) image size.
    TP_max = _round_up(P, 128)
    TP = min(_round_up(tile_pixels, 128), TP_max)
    if batch_block is None and N * per_pixel_bytes * TP < budget_bytes:
        # Whole batch at this tile is under budget: widen the pixel tile so
        # each grid step moves a sizeable block (amortizes ~0.35us/step).
        TP_wide = _round_up(budget_bytes // max(1, N * per_pixel_bytes), 128)
        TP = min(TP_max, max(TP, TP_wide))
    n_chunks = _cdiv(P, TP)

    # Batch packing: NB need NOT divide N (partial trailing block is masked).
    if batch_block is None:
        NB = max(1, min(N, budget_bytes // max(1, per_pixel_bytes * TP)))
    else:
        NB = max(1, min(int(batch_block), N))
    n_bblk = _cdiv(N, NB)

    mask_pixels = (n_chunks * TP != P)   # trailing pixel chunk is partial
    mask_batch = (n_bblk * NB != N)      # trailing batch block is partial

    # Narrow target dtype before the transpose: 4x less HBM traffic for both
    # the XLA swapaxes pass and the kernel DMA when C is small.
    if C <= 127:
        tdt = jnp.int8
    elif C <= 32767:
        tdt = jnp.int16
    else:
        tdt = jnp.int32

    # Keep pred in its HBM dtype; reshape is free. transpose(1,3)+view quirk:
    # class at pred pixel (i, j) comes from target[n, j, i] (H == W).
    pred_flat = pred.reshape(N, C, P)
    tgt_t = jnp.swapaxes(target.astype(tdt), 1, 2).reshape(N, 1, P)

    def kernel(pred_ref, tgt_ref, num_ref, den_ref):
        x = pred_ref[...]                            # (NB, C, TP) logits
        tgt = tgt_ref[...].astype(jnp.int32)         # (NB, 1, TP) class ids

        # Numerically stable softmax pieces over the class axis (axis=1).
        # Max is exact in the input dtype; the rest runs in f32.
        m = jnp.max(x, axis=1, keepdims=True).astype(jnp.float32)
        shifted = x.astype(jnp.float32) - m          # (NB, C, TP)
        e = jnp.exp(shifted)
        s = jnp.sum(e, axis=1, keepdims=True)        # (NB, 1, TP)

        # Only the target class contributes: pick its shifted logit via an
        # integer one-hot masked sum, then work on (NB, 1, TP) quantities.
        cls = jax.lax.broadcasted_iota(jnp.int32, shifted.shape, 1)
        onehot = cls == tgt
        x_t = jnp.sum(jnp.where(onehot, shifted, 0.0), axis=1, keepdims=True)

        logp_t = x_t - jnp.log(s)                    # log_softmax @ target class
        p_t = jnp.exp(logp_t)                        # softmax @ target class
        focal_t = -ALPHA * (1.0 - p_t) ** GAMMA * logp_t

        # Validity: in-range label AND (if partial blocks) in-bounds pixel/row.
        # Out-of-range labels contribute 0 to both numerator and denominator,
        # exactly matching the scatter-based one-hot of the reference.
        valid = (tgt >= 0) & (tgt < C)
        if mask_pixels:
            c = pl.program_id(0)
            pix = c * TP + jax.lax.broadcasted_iota(jnp.int32, tgt.shape, 2)
            valid = valid & (pix < P)
        if mask_batch:
            b = pl.program_id(1)
            row = b * NB + jax.lax.broadcasted_iota(jnp.int32, tgt.shape, 0)
            valid = valid & (row < N)

        num = jnp.sum(jnp.where(valid, focal_t, 0.0), axis=0)   # (1, TP)
        den = jnp.sum(valid.astype(jnp.float32), axis=0)        # (1, TP)
        num_ref[...] = num.reshape(num_ref.shape)
        den_ref[...] = den.reshape(den_ref.shape)

    num_out, den_out = pl.pallas_call(
        kernel,
        out_shape=(
            jax.ShapeDtypeStruct((n_chunks, n_bblk, 1, TP), jnp.float32),
            jax.ShapeDtypeStruct((n_chunks, n_bblk, 1, TP), jnp.float32),
        ),
        grid_spec=pltpu.PrefetchScalarGridSpec(
            num_scalar_prefetch=0,
            grid=(n_chunks, n_bblk),
            in_specs=[
                pl.BlockSpec((NB, C, TP), lambda c, b: (b, 0, c)),
                pl.BlockSpec((NB, 1, TP), lambda c, b: (b, 0, c)),
            ],
            out_specs=[
                pl.BlockSpec((1, 1, 1, TP), lambda c, b: (c, b, 0, 0)),
                pl.BlockSpec((1, 1, 1, TP), lambda c, b: (c, b, 0, 0)),
            ],
        ),
        compiler_params=pltpu.CompilerParams(
            dimension_semantics=("parallel", "parallel"),
            vmem_limit_bytes=vmem_limit),
    )(pred_flat, tgt_t)

    # Tiny final reduction in plain JAX over the per-(chunk, batch) partials.
    if reduction == "mean":
        return num_out.sum() / (den_out.sum() + EPS)
    return num_out.sum()


def focal_loss_ref(pred, target):
    """Pure-JAX reference mirroring the PyTorch module exactly."""
    C = pred.shape[1]
    pred = pred.astype(jnp.float32)
    logp = jax.nn.log_softmax(pred, axis=1)
    p = jax.nn.softmax(pred, axis=1)
    onehot = jax.nn.one_hot(target, C, dtype=jnp.float32)      # (N, H, W, C)
    # transpose(1, 3) then view(pred.shape): mask[n,c,i,j] = onehot[n,j,i,c]
    mask = jnp.transpose(onehot, (0, 3, 2, 1))
    loss = -ALPHA * (1.0 - p) ** GAMMA * logp * mask
    return loss.sum() / (mask.sum() + EPS)


if __name__ == "__main__":
    key = jax.random.PRNGKey(0)
    k1, k2, k3, k4, k5, k6 = jax.random.split(key, 6)

    # Test 1: the module's nominal small shape, float32 logits, aligned tiles.
    N, C, H, W = 2, 4, 16, 16
    pred = jax.random.normal(k1, (N, C, H, W), dtype=jnp.float32)
    target = jax.random.randint(k2, (N, H, W), 0, C, dtype=jnp.int32)
    out = jax.block_until_ready(focal_loss(pred, target))
    ref = focal_loss_ref(pred, target)
    np.testing.assert_allclose(np.asarray(out), np.asarray(ref),
                               rtol=1e-5, atol=1e-6)

    # Test 2: bf16 logits, multi-chunk pixel tiling, one batch row per block.
    N2, C2, H2, W2 = 2, 4, 64, 64
    pred2 = jax.random.normal(k3, (N2, C2, H2, W2), dtype=jnp.float32)
    target2 = jax.random.randint(k4, (N2, H2, W2), 0, C2, dtype=jnp.int32)
    pred2_bf16 = pred2.astype(jnp.bfloat16)
    out2 = jax.block_until_ready(
        focal_loss(pred2_bf16, target2, tile_pixels=1024, batch_block=1))
    ref2 = focal_loss_ref(pred2_bf16, target2)
    np.testing.assert_allclose(np.asarray(out2), np.asarray(ref2),
                               rtol=1e-4, atol=1e-5)

    # Test 3: non-aligned shapes -> partial trailing pixel chunk AND partial
    # trailing batch block, exercising the in-kernel validity masking.
    N3, C3, H3, W3 = 3, 5, 24, 24          # P = 576, not a multiple of 256
    pred3 = jax.random.normal(k5, (N3, C3, H3, W3), dtype=jnp.float32)
    target3 = jax.random.randint(k6, (N3, H3, W3), 0, C3, dtype=jnp.int32)
    out3 = jax.block_until_ready(
        focal_loss(pred3, target3, tile_pixels=256, batch_block=2))
    ref3 = focal_loss_ref(pred3, target3)
    np.testing.assert_allclose(np.asarray(out3), np.asarray(ref3),
                               rtol=1e-5, atol=1e-6)

    print("KERNEL_OK")
</pallas_src>

<mosaic_0001>
module attributes {stable_mosaic.version = 11 : i64} {
  func.func @kernel(%arg0: i32, %arg1: i32, %arg2: memref<2x4x256xf32, #tpu.memory_space<vmem>>, %arg3: memref<2x1x256xi8, #tpu.memory_space<vmem>>, %arg4: memref<1x1x1x256xf32, #tpu.memory_space<vmem>>, %arg5: memref<1x1x1x256xf32, #tpu.memory_space<vmem>>) attributes {dimension_semantics = [#tpu.dimension_semantics<parallel>, #tpu.dimension_semantics<parallel>], iteration_bounds = array<i64: 1, 1>, scalar_prefetch = 0 : i64, scratch_operands = 0 : i64, tpu.core_type = #tpu.core_type<tc>, window_params = [{transform_indices = @transform_0, window_bounds = array<i64: 2, 4, 256>}, {transform_indices = @transform_1, window_bounds = array<i64: 2, 1, 256>}, {transform_indices = @transform_2, window_bounds = array<i64: 1, 1, 1, 256>}, {transform_indices = @transform_3, window_bounds = array<i64: 1, 1, 1, 256>}]} {
    %c0 = arith.constant 0 : index
    %c0_0 = arith.constant 0 : index
    %c0_1 = arith.constant 0 : index
    %0 = vector.load %arg2[%c0, %c0_0, %c0_1] : memref<2x4x256xf32, #tpu.memory_space<vmem>>, vector<2x4x256xf32>
    %c0_2 = arith.constant 0 : index
    %c0_3 = arith.constant 0 : index
    %c0_4 = arith.constant 0 : index
    %1 = vector.load %arg3[%c0_2, %c0_3, %c0_4] : memref<2x1x256xi8, #tpu.memory_space<vmem>>, vector<2x1x256xi8>
    %2 = arith.extsi %1 : vector<2x1x256xi8> to vector<2x1x256xi32>
    %cst = arith.constant dense<0xFF800000> : vector<2x256xf32>
    %3 = vector.multi_reduction <maximumf>, %0, %cst [1] : vector<2x4x256xf32> to vector<2x256xf32>
    %4 = vector.shape_cast %3 : vector<2x256xf32> to vector<2x1x256xf32>
    %5 = vector.broadcast %4 : vector<2x1x256xf32> to vector<2x4x256xf32>
    %6 = arith.subf %0, %5 : vector<2x4x256xf32>
    %7 = math.exp %6 : vector<2x4x256xf32>
    %cst_5 = arith.constant dense<0.000000e+00> : vector<2x256xf32>
    %8 = vector.multi_reduction <add>, %7, %cst_5 [1] : vector<2x4x256xf32> to vector<2x256xf32>
    %9 = vector.shape_cast %8 : vector<2x256xf32> to vector<2x1x256xf32>
    %10 = tpu.iota {dimensions = array<i32: 1>} : vector<2x4x256xi32>
    %11 = vector.broadcast %2 : vector<2x1x256xi32> to vector<2x4x256xi32>
    %12 = arith.cmpi eq, %10, %11 : vector<2x4x256xi32>
    %cst_6 = arith.constant 0.000000e+00 : f32
    %13 = vector.broadcast %cst_6 : f32 to vector<2x4x256xf32>
    %14 = arith.select %12, %6, %13 : vector<2x4x256xi1>, vector<2x4x256xf32>
    %cst_7 = arith.constant dense<0.000000e+00> : vector<2x256xf32>
    %15 = vector.multi_reduction <add>, %14, %cst_7 [1] : vector<2x4x256xf32> to vector<2x256xf32>
    %16 = vector.shape_cast %15 : vector<2x256xf32> to vector<2x1x256xf32>
    %17 = math.log %9 : vector<2x1x256xf32>
    %18 = arith.subf %16, %17 : vector<2x1x256xf32>
    %19 = math.exp %18 : vector<2x1x256xf32>
    %cst_8 = arith.constant 1.000000e+00 : f32
    %20 = vector.broadcast %cst_8 : f32 to vector<2x1x256xf32>
    %21 = arith.subf %20, %19 : vector<2x1x256xf32>
    %22 = arith.mulf %21, %21 : vector<2x1x256xf32>
    %cst_9 = arith.constant -1.000000e+00 : f32
    %23 = vector.broadcast %cst_9 : f32 to vector<2x1x256xf32>
    %24 = arith.mulf %23, %22 : vector<2x1x256xf32>
    %25 = arith.mulf %24, %18 : vector<2x1x256xf32>
    %c0_i32 = arith.constant 0 : i32
    %26 = vector.broadcast %c0_i32 : i32 to vector<2x1x256xi32>
    %27 = arith.cmpi sge, %2, %26 : vector<2x1x256xi32>
    %c4_i32 = arith.constant 4 : i32
    %28 = vector.broadcast %c4_i32 : i32 to vector<2x1x256xi32>
    %29 = arith.cmpi slt, %2, %28 : vector<2x1x256xi32>
    %30 = arith.andi %27, %29 : vector<2x1x256xi1>
    %cst_10 = arith.constant 0.000000e+00 : f32
    %31 = vector.broadcast %cst_10 : f32 to vector<2x1x256xf32>
    %32 = arith.select %30, %25, %31 : vector<2x1x256xi1>, vector<2x1x256xf32>
    %cst_11 = arith.constant dense<0.000000e+00> : vector<1x256xf32>
    %33 = vector.multi_reduction <add>, %32, %cst_11 [0] : vector<2x1x256xf32> to vector<1x256xf32>
    %34 = arith.extui %30 : vector<2x1x256xi1> to vector<2x1x256xi32>
    %35 = arith.sitofp %34 : vector<2x1x256xi32> to vector<2x1x256xf32>
    %cst_12 = arith.constant dense<0.000000e+00> : vector<1x256xf32>
    %36 = vector.multi_reduction <add>, %35, %cst_12 [0] : vector<2x1x256xf32> to vector<1x256xf32>
    %37 = vector.shape_cast %33 : vector<1x256xf32> to vector<1x1x1x256xf32>
    %c0_13 = arith.constant 0 : index
    %c0_14 = arith.constant 0 : index
    %c0_15 = arith.constant 0 : index
    %c0_16 = arith.constant 0 : index
    %38 = vector.load %arg4[%c0_13, %c0_14, %c0_15, %c0_16] : memref<1x1x1x256xf32, #tpu.memory_space<vmem>>, vector<1x1x1x256xf32>
    tpu.vector_store %arg4[%c0_13, %c0_14, %c0_15, %c0_16], %37 {strides = array<i32>} : memref<1x1x1x256xf32, #tpu.memory_space<vmem>>, vector<1x1x1x256xf32>,
    %39 = vector.shape_cast %36 : vector<1x256xf32> to vector<1x1x1x256xf32>
    %c0_17 = arith.constant 0 : index
    %c0_18 = arith.constant 0 : index
    %c0_19 = arith.constant 0 : index
    %c0_20 = arith.constant 0 : index
    %40 = vector.load %arg5[%c0_17, %c0_18, %c0_19, %c0_20] : memref<1x1x1x256xf32, #tpu.memory_space<vmem>>, vector<1x1x1x256xf32>
    tpu.vector_store %arg5[%c0_17, %c0_18, %c0_19, %c0_20], %39 {strides = array<i32>} : memref<1x1x1x256xf32, #tpu.memory_space<vmem>>, vector<1x1x1x256xf32>,
    return
  }
  func.func @transform_0(%arg0: i32, %arg1: i32) -> (i32, i32, i32) {
    %c0_i32 = arith.constant 0 : i32
    %c0_i32_0 = arith.constant 0 : i32
    return %arg1, %c0_i32, %arg0 : i32, i32, i32
  }
  func.func @transform_1(%arg0: i32, %arg1: i32) -> (i32, i32, i32) {
    %c0_i32 = arith.constant 0 : i32
    %c0_i32_0 = arith.constant 0 : i32
    return %arg1, %c0_i32, %arg0 : i32, i32, i32
  }
  func.func @transform_2(%arg0: i32, %arg1: i32) -> (i32, i32, i32, i32) {
    %c0_i32 = arith.constant 0 : i32
    %c0_i32_0 = arith.constant 0 : i32
    %c0_i32_1 = arith.constant 0 : i32
    return %arg0, %arg1, %c0_i32, %c0_i32_0 : i32, i32, i32, i32
  }
  func.func @transform_3(%arg0: i32, %arg1: i32) -> (i32, i32, i32, i32) {
    %c0_i32 = arith.constant 0 : i32
    %c0_i32_0 = arith.constant 0 : i32
    %c0_i32_1 = arith.constant 0 : i32
    return %arg0, %arg1, %c0_i32, %c0_i32_0 : i32, i32, i32, i32
  }
}

</mosaic_0001>

<llo_original>
// kernel: tpu_custom_call.1
$region0: #{tpu_custom_call.1}
  #allocation0 [shape = 'u32[]', space=smem, size = 0x4, offset = 0x4, fixed_abs, tag = 'smem constant byte address 0x4 - core index']
  #allocation1 [shape = 'u32[144,128]{1,0:T(1,128)}', space=vmem, size = 0x12000, scoped, tag = 'internal scratch']
  %s0 = inlined_call_operand.hbm [shape: f32[2,4,256], index: 0, kind: input, shape index: {}]
  %s1 = inlined_call_operand.vmem [shape: s8[2,1,256], index: 1, kind: input, shape index: {}]
  %s2 = inlined_call_operand.hbm [shape: f32[1,1,1,256], index: 2, kind: output, shape index: {0}]
  %s3 = inlined_call_operand.hbm [shape: f32[1,1,1,256], index: 3, kind: output, shape index: {1}]
  %4 = xla_tuple %s2, %s3
  %s5 = sld [smem:[#allocation0]]
  $region30: #{tpu_custom_call.1} parent=0
    _
  %s7 = ssub.s32 1, %s5
  %s8 = scalar_select 0, %s7, %s5
  $region1: #{tpu_custom_call.1} parent=0
    #allocation2 [shape = 'u8[8192]{0}', space=vmem, size = 0x2000, scoped, tag = 'input window, operand 0, single buffered']
    #allocation3 [shape = 's32[1]{0}', space=sflag, size = 0x4, scoped, tag = 'scoped memory for tpu_custom_call.1']
    #allocation4 [shape = 's32[1]{0}', space=sflag, size = 0x4, scoped, tag = 'scoped memory for tpu_custom_call.1']
    #allocation5 [shape = 'u8[1024]{0}', space=vmem, size = 0x400, scoped, tag = 'output window, operand 0, single buffered']
    #allocation6 [shape = 'u8[1024]{0}', space=vmem, size = 0x400, scoped, tag = 'output window, operand 1, single buffered']
    #allocation7 [shape = 's32[1]{0}', space=sflag, size = 0x4, scoped, tag = 'scoped memory for tpu_custom_call.1']
    %9 = vsyncpa [#allocation3], 0
    %10 = vsyncpa [#allocation4], 0
    %11 = vsyncpa [#allocation7], 0
    // Predicated region
    $region2: #{tpu_custom_call.1} parent=1 // pred_check
      _
    $region3: #{tpu_custom_call.1} parent=1 // pred_check_branch
      %13 = sbr.rel (0) target = $region5
    $region4: #{tpu_custom_call.1} parent=1 // pred_region
      %s15 = ssub.s32 256, 256
      %16 = vsyncadd [#allocation3], %s15
      %s17 = sshll.u32 [#allocation2], 4
      %s18 = int_to_ptr.vmem [resolvable:$true] %s17
      %23 = dma.hbm_to_vmem [thread:$0]  %s0, 256, %s18, [#allocation3], 128, 128, 8
    $region5: #{tpu_custom_call.1} parent=1 // pred_fallthru
      _
    // Predicated region
    $region6: #{tpu_custom_call.1} parent=1 // pred_check
      _
    $region7: #{tpu_custom_call.1} parent=1 // pred_check_branch
      %25 = sbr.rel (0) target = $region9
    $region8: #{tpu_custom_call.1} parent=1 // pred_region
      _
    $region9: #{tpu_custom_call.1} parent=1 // pred_fallthru
      _
    // Predicated region
    $region10: #{tpu_custom_call.1} parent=1 // pred_check
      _
    $region11: #{tpu_custom_call.1} parent=1 // pred_check_branch
      %27 = sbr.rel (0) target = $region13
    $region12: #{tpu_custom_call.1} parent=1 // pred_region
      %28 = dma.done [#allocation3], 256
    $region13: #{tpu_custom_call.1} parent=1 // pred_fallthru
      _
    %v29 = vld [vmem:[#allocation2] sm:$0xff]
    %v30 = vld [vmem:[#allocation2 + $0x8] sm:$0xff]
    %v31 = vld [vmem:[%s1] sm:$0x3]
    %v32 = vld [vmem:[%s1 + $0x2] sm:$0x3]
    %v33 = vunpack.c.0.s8 %v31
    %v34 = vunpack.c.0.s8 %v32
    %v37 = vcombine.high %v29, %v29
    %v38 = vcombine.high %v30, %v30
    %vm41 = vcmask 1043456
    %v42 = vsel %vm41, %v29, -inf
    %v43 = vrot.slane %v42, 4
    %v44 = vmax.f32 %v42, %v43
    %v45 = vrot.slane %v44, 2
    %v46 = vmax.f32 %v44, %v45
    %v47 = vrot.slane %v46, 1
    %v48 = vmax.f32 %v46, %v47
    %v49 = vsel %vm41, %v37, -inf
    %v50 = vrot.slane %v49, 4
    %v51 = vmax.f32 %v49, %v50
    %v52 = vrot.slane %v51, 2
    %v53 = vmax.f32 %v51, %v52
    %v54 = vrot.slane %v53, 1
    %v55 = vmax.f32 %v53, %v54
    %v56 = vsel %vm41, %v30, -inf
    %v57 = vrot.slane %v56, 4
    %v58 = vmax.f32 %v56, %v57
    %v59 = vrot.slane %v58, 2
    %v60 = vmax.f32 %v58, %v59
    %v61 = vrot.slane %v60, 1
    %v62 = vmax.f32 %v60, %v61
    %v63 = vsel %vm41, %v38, -inf
    %v64 = vrot.slane %v63, 4
    %v65 = vmax.f32 %v63, %v64
    %v66 = vrot.slane %v65, 2
    %v67 = vmax.f32 %v65, %v66
    %v68 = vrot.slane %v67, 1
    %v69 = vmax.f32 %v67, %v68
    %v74 = vcombine.low %v48, %v55
    %v75 = vcombine.low %v62, %v69
    %v78 = vsub.f32 %v29, %v74
    %v79 = vsub.f32 %v30, %v75
    %v80 = vmul.f32 %v78, 1.442695
    %v81 = vpow.pop %v80
    %v82 = vmul.f32 %v79, 1.442695
    %v83 = vpow.pop %v82
    %v86 = vcombine.high %v81, %v81
    %v87 = vcombine.high %v83, %v83
    %v90 = vsel %vm41, %v81, 0.0
    %v91 = vrot.slane %v90, 4
    %v92 = vadd.f32 %v90, %v91
    %v93 = vrot.slane %v92, 2
    %v94 = vadd.f32 %v92, %v93
    %v95 = vrot.slane %v94, 1
    %v96 = vadd.f32 %v94, %v95
    %v97 = vsel %vm41, %v86, 0.0
    %v98 = vrot.slane %v97, 4
    %v99 = vadd.f32 %v97, %v98
    %v100 = vrot.slane %v99, 2
    %v101 = vadd.f32 %v99, %v100
    %v102 = vrot.slane %v101, 1
    %v103 = vadd.f32 %v101, %v102
    %v104 = vsel %vm41, %v83, 0.0
    %v105 = vrot.slane %v104, 4
    %v106 = vadd.f32 %v104, %v105
    %v107 = vrot.slane %v106, 2
    %v108 = vadd.f32 %v106, %v107
    %v109 = vrot.slane %v108, 1
    %v110 = vadd.f32 %v108, %v109
    %v111 = vsel %vm41, %v87, 0.0
    %v112 = vrot.slane %v111, 4
    %v113 = vadd.f32 %v111, %v112
    %v114 = vrot.slane %v113, 2
    %v115 = vadd.f32 %v113, %v114
    %v116 = vrot.slane %v115, 1
    %v117 = vadd.f32 %v115, %v116
    %v118 = vlaneseq
    %v119 = vshrl.u32 %v118, 7
    %v120 = vlaneseq
    %v121 = vshrl.u32 %v120, 7
    %v122 = vsub.s32 0, %v121
    %v123 = vrot.slane %v33, %v122
    %v124 = vlaneseq
    %v125 = vshrl.u32 %v124, 7
    %v126 = vsub.s32 4, %v125
    %v127 = vrot.slane %v33, %v126
    %v128 = vlaneseq
    %v129 = vshrl.u32 %v128, 7
    %v130 = vsub.s32 0, %v129
    %v131 = vrot.slane %v34, %v130
    %v132 = vlaneseq
    %v133 = vshrl.u32 %v132, 7
    %v134 = vsub.s32 4, %v133
    %v135 = vrot.slane %v34, %v134
    %v136 = vlaneseq
    %v137 = vshrl.u32 %v136, 7
    %v138 = vsub.s32 0, %v137
    %v139 = vrot.slane %v123, %v138
    %v140 = vlaneseq
    %v141 = vshrl.u32 %v140, 7
    %v142 = vsub.s32 0, %v141
    %v143 = vrot.slane %v127, %v142
    %v144 = vlaneseq
    %v145 = vshrl.u32 %v144, 7
    %v146 = vsub.s32 0, %v145
    %v147 = vrot.slane %v131, %v146
    %v148 = vlaneseq
    %v149 = vshrl.u32 %v148, 7
    %v150 = vsub.s32 0, %v149
    %v151 = vrot.slane %v135, %v150
    %vm152 = vcmp.eq.s32.totalorder %v119, %v139
    %vm153 = vcmp.eq.s32.totalorder %v119, %v143
    %vm154 = vcmp.eq.s32.totalorder %v119, %v147
    %vm155 = vcmp.eq.s32.totalorder %v119, %v151
    %v158 = vcombine.high %v78, %v78
    %v159 = vcombine.high %v79, %v79
    %v162 = vsel %vm152, %v78, 0.0
    %v163 = vsel %vm153, %v158, 0.0
    %v164 = vsel %vm154, %v79, 0.0
    %v165 = vsel %vm155, %v159, 0.0
    %v166 = vsel %vm41, %v162, 0.0
    %v167 = vrot.slane %v166, 4
    %v168 = vadd.f32 %v166, %v167
    %v169 = vrot.slane %v168, 2
    %v170 = vadd.f32 %v168, %v169
    %v171 = vrot.slane %v170, 1
    %v172 = vadd.f32 %v170, %v171
    %v173 = vsel %vm41, %v163, 0.0
    %v174 = vrot.slane %v173, 4
    %v175 = vadd.f32 %v173, %v174
    %v176 = vrot.slane %v175, 2
    %v177 = vadd.f32 %v175, %v176
    %v178 = vrot.slane %v177, 1
    %v179 = vadd.f32 %v177, %v178
    %v180 = vsel %vm41, %v164, 0.0
    %v181 = vrot.slane %v180, 4
    %v182 = vadd.f32 %v180, %v181
    %v183 = vrot.slane %v182, 2
    %v184 = vadd.f32 %v182, %v183
    %v185 = vrot.slane %v184, 1
    %v186 = vadd.f32 %v184, %v185
    %v187 = vsel %vm41, %v165, 0.0
    %v188 = vrot.slane %v187, 4
    %v189 = vadd.f32 %v187, %v188
    %v190 = vrot.slane %v189, 2
    %v191 = vadd.f32 %v189, %v190
    %v192 = vrot.slane %v191, 1
    %v193 = vadd.f32 %v191, %v192
    %v194 = vlog2.pop %v96
    %v195 = vmul.f32 %v194, 0.6931472
    %v196 = vlog2.pop %v103
    %v197 = vmul.f32 %v196, 0.6931472
    %v198 = vlog2.pop %v110
    %v199 = vmul.f32 %v198, 0.6931472
    %v200 = vlog2.pop %v117
    %v201 = vmul.f32 %v200, 0.6931472
    %v202 = vsub.f32 %v172, %v195
    %v203 = vsub.f32 %v179, %v197
    %v204 = vsub.f32 %v186, %v199
    %v205 = vsub.f32 %v193, %v201
    %v206 = vmul.f32 %v202, 1.442695
    %v207 = vpow.pop %v206
    %v208 = vmul.f32 %v203, 1.442695
    %v209 = vpow.pop %v208
    %v210 = vmul.f32 %v204, 1.442695
    %v211 = vpow.pop %v210
    %v212 = vmul.f32 %v205, 1.442695
    %v213 = vpow.pop %v212
    %v214 = vsub.f32 1.0, %v207
    %v215 = vsub.f32 1.0, %v209
    %v216 = vsub.f32 1.0, %v211
    %v217 = vsub.f32 1.0, %v213
    %v218 = vmul.f32 %v214, %v214
    %v219 = vmul.f32 %v215, %v215
    %v220 = vmul.f32 %v216, %v216
    %v221 = vmul.f32 %v217, %v217
    %v222 = vmul.f32 %v218, -1.0
    %v223 = vmul.f32 %v219, -1.0
    %v224 = vmul.f32 %v220, -1.0
    %v225 = vmul.f32 %v221, -1.0
    %v226 = vmul.f32 %v222, %v202
    %v227 = vmul.f32 %v223, %v203
    %v228 = vmul.f32 %v224, %v204
    %v229 = vmul.f32 %v225, %v205
    %vm230 = vcmp.ge.s32.totalorder %v33, 0
    %vm231 = vcmp.ge.s32.totalorder %v34, 0
    %vm232 = vcmp.lt.s32.totalorder %v33, 4
    %vm233 = vcmp.lt.s32.totalorder %v34, 4
    %vm234 = vmand %vm230, %vm232
    %vm235 = vmand %vm231, %vm233
    %v240 = vcombine.low %v226, %v227
    %v241 = vcombine.low %v228, %v229
    %v244 = vsel %vm234, %v240, 0.0
    %v245 = vsel %vm235, %v241, 0.0
    %v248 = vlaneseq
    %v249 = vshrl.u32 %v248, 7
    %v250 = vsub.s32 0, %v249
    %v251 = vrot.slane %v244, %v250
    %v252 = vlaneseq
    %v253 = vshrl.u32 %v252, 7
    %v254 = vsub.s32 4, %v253
    %v255 = vrot.slane %v244, %v254
    %v256 = vlaneseq
    %v257 = vshrl.u32 %v256, 7
    %v258 = vsub.s32 0, %v257
    %v259 = vrot.slane %v245, %v258
    %v260 = vlaneseq
    %v261 = vshrl.u32 %v260, 7
    %v262 = vsub.s32 4, %v261
    %v263 = vrot.slane %v245, %v262
    %vm268 = vcmask 1040384
    %v269 = vsel %vm268, %v251, 0.0
    %v270 = vsel %vm268, %v259, 0.0
    %v271 = vadd.f32 %v269, %v270
    %v272 = vsel %vm268, %v255, 0.0
    %v273 = vsel %vm268, %v263, 0.0
    %v274 = vadd.f32 %v272, %v273
    %v275 = vsel %vm234, 1, 0
    %v276 = vsel %vm235, 1, 0
    %v277 = vcvt.s32.f32 %v275
    %v278 = vcvt.s32.f32 %v276
    %v281 = vlaneseq
    %v282 = vshrl.u32 %v281, 7
    %v283 = vsub.s32 0, %v282
    %v284 = vrot.slane %v277, %v283
    %v285 = vlaneseq
    %v286 = vshrl.u32 %v285, 7
    %v287 = vsub.s32 4, %v286
    %v288 = vrot.slane %v277, %v287
    %v289 = vlaneseq
    %v290 = vshrl.u32 %v289, 7
    %v291 = vsub.s32 0, %v290
    %v292 = vrot.slane %v278, %v291
    %v293 = vlaneseq
    %v294 = vshrl.u32 %v293, 7
    %v295 = vsub.s32 4, %v294
    %v296 = vrot.slane %v278, %v295
    %v301 = vsel %vm268, %v284, 0.0
    %v302 = vsel %vm268, %v292, 0.0
    %v303 = vadd.f32 %v301, %v302
    %v304 = vsel %vm268, %v288, 0.0
    %v305 = vsel %vm268, %v296, 0.0
    %v306 = vadd.f32 %v304, %v305
    %v309 = vcombine.low %v271, %v274
    %v311 = vunpack.c.l.s4 1966171168
    %v312 = vunpack.c.0.s8 %v311
    %v313 = vlaneseq
    %v314 = vshrl.u32 %v313, 7
    %v315 = vsub.s32 %v312, %v314
    %v316 = vrot.slane %v309, %v315
    %v318 = vunpack.c.l.s4 1966171168
    %v319 = vunpack.c.0.s8 %v318
    %v320 = vlaneseq
    %v321 = vshrl.u32 %v320, 7
    %v322 = vsub.s32 %v319, %v321
    %v323 = vrot.slane %v316, %v322
    %v325 = vlaneseq
    %vm326 = vcmp.ge.s32.totalorder %v325, 0
    %vm327 = vcmp.lt.s32.totalorder %v325, 256
    %vm328 = vmand %vm326, %vm327
    %329 = vst.msk [vmem:[#allocation5] sm:$0x3] %vm328, %v323
    %v332 = vcombine.low %v303, %v306
    %v334 = vunpack.c.l.s4 1966171168
    %v335 = vunpack.c.0.s8 %v334
    %v336 = vlaneseq
    %v337 = vshrl.u32 %v336, 7
    %v338 = vsub.s32 %v335, %v337
    %v339 = vrot.slane %v332, %v338
    %v341 = vunpack.c.l.s4 1966171168
    %v342 = vunpack.c.0.s8 %v341
    %v343 = vlaneseq
    %v344 = vshrl.u32 %v343, 7
    %v345 = vsub.s32 %v342, %v344
    %v346 = vrot.slane %v339, %v345
    %348 = vst.msk [vmem:[#allocation6] sm:$0x3] %vm328, %v346
    // Predicated region
    $region14: #{tpu_custom_call.1} parent=1 // pred_check
      _
    $region15: #{tpu_custom_call.1} parent=1 // pred_check_branch
      %350 = sbr.rel (0) target = $region17
    $region16: #{tpu_custom_call.1} parent=1 // pred_region
      %s352 = ssub.s32 32, 32
      %353 = vsyncadd [#allocation4], %s352
      %s355 = sshll.u32 [#allocation5], 4
      %s356 = int_to_ptr.vmem [resolvable:$true] %s355
      %358 = dma.vmem_to_hbm [thread:$0]  %s356, 32, %s2, [#allocation4]
    $region17: #{tpu_custom_call.1} parent=1 // pred_fallthru
      _
    // Predicated region
    $region18: #{tpu_custom_call.1} parent=1 // pred_check
      _
    $region19: #{tpu_custom_call.1} parent=1 // pred_check_branch
      %360 = sbr.rel (0) target = $region21
    $region20: #{tpu_custom_call.1} parent=1 // pred_region
      %s362 = ssub.s32 32, 32
      %363 = vsyncadd [#allocation7], %s362
      %s365 = sshll.u32 [#allocation6], 4
      %s366 = int_to_ptr.vmem [resolvable:$true] %s365
      %368 = dma.vmem_to_hbm [thread:$0]  %s366, 32, %s3, [#allocation7]
    $region21: #{tpu_custom_call.1} parent=1 // pred_fallthru
      _
    // Predicated region
    $region22: #{tpu_custom_call.1} parent=1 // pred_check
      _
    $region23: #{tpu_custom_call.1} parent=1 // pred_check_branch
      %370 = sbr.rel (0) target = $region25
    $region24: #{tpu_custom_call.1} parent=1 // pred_region
      %371 = dma.done [#allocation4], 32
    $region25: #{tpu_custom_call.1} parent=1 // pred_fallthru
      _
    // Predicated region
    $region26: #{tpu_custom_call.1} parent=1 // pred_check
      _
    $region27: #{tpu_custom_call.1} parent=1 // pred_check_branch
      %373 = sbr.rel (0) target = $region29
    $region28: #{tpu_custom_call.1} parent=1 // pred_region
      %374 = dma.done [#allocation7], 32
    $region29: #{tpu_custom_call.1} parent=1 // pred_fallthru
      _
    %375 = vsyncpa [#allocation3], 1
    %376 = vsyncpa [#allocation4], 1
    %377 = vsyncpa [#allocation7], 1

</llo_original>
